<compile_context>
chip_gen: v7x
topology: tpu7x:2x2x1
jax: 0.10.0
libtpu: 0.0.40
codegen_flags: <defaults>
</compile_context>

<pallas_src>
import functools

import jax
import jax.numpy as jnp
from jax import lax
from jax.experimental import pallas as pl
from jax.experimental.pallas import tpu as pltpu


def _cdiv(a, b):
    return -(-a // b)


def _round_up(x, m):
    return (x + m - 1) // m * m


def _ls_ce_kernel(preds_ref, tgt_ref, out_ref, *, n_rows, n_cls):
    i = pl.program_id(0)
    tile_n = preds_ref.shape[0]

    x = preds_ref[...]                                       # (tile_n, C), input dtype
    tgt = tgt_ref[...]                                       # (tile_n, 1) int32

    # Row-validity mask: the last block may run past the true batch (ragged
    # grid, no host-side pad).  where-style masking keeps any garbage in the
    # out-of-bounds rows strictly row-local.
    row_ids = i * tile_n + lax.broadcasted_iota(jnp.int32, (tile_n, 1), 0)
    row_valid = row_ids < n_rows                             # (tile_n, 1) bool

    # Row max: exact in the input dtype (bf16 max of bf16 values is exact),
    # so it stays a narrow pass; only the (tile_n, 1) result is upcast.
    m = jnp.max(x, axis=1, keepdims=True).astype(jnp.float32)

    # logsumexp path needs f32 (exp + running sum).
    ex = jnp.exp(x.astype(jnp.float32) - m)                  # (tile_n, C) f32
    s = m + jnp.log(jnp.sum(ex, axis=1, keepdims=True))      # (tile_n, 1) f32

    # Logit at the target class: one-hot select via a lane iota (no dynamic
    # gather on TPU).  Select + sum stay in the input dtype — exact, since
    # each row has exactly one nonzero term.
    col = lax.broadcasted_iota(jnp.int32, x.shape, 1)        # (tile_n, C)
    sel = jnp.where(col == tgt, x, jnp.zeros((), x.dtype))
    x_tgt = jnp.sum(sel, axis=1, keepdims=True).astype(jnp.float32)

    # Row-sum of logits.  For bf16 inputs use the otherwise-idle MXU (ones
    # column matmul, f32 accumulation -> exact); for f32 keep the VPU/XLU
    # reduce so no bf16 cast is introduced.
    if x.dtype == jnp.bfloat16:
        ones_col = (lax.broadcasted_iota(jnp.int32, (n_cls, 128), 1) == 0
                    ).astype(x.dtype)                        # (C, 128), only col 0 = 1
        sum_x = jnp.dot(x, ones_col,
                        preferred_element_type=jnp.float32)[:, :1]
    else:
        sum_x = jnp.sum(x.astype(jnp.float32), axis=1, keepdims=True)

    #   -sum_j logp_ij    = C*s - sum_x
    #   -logp_i,target_i  = s - x_tgt
    row_sum = jnp.float32(n_cls) * s - sum_x                 # (tile_n, 1)
    row_nll = s - x_tgt                                      # (tile_n, 1)

    zero = jnp.zeros_like(row_sum)
    p_sum = jnp.sum(jnp.where(row_valid, row_sum, zero))     # scalar partial
    p_nll = jnp.sum(jnp.where(row_valid, row_nll, zero))     # scalar partial

    # Lane-dense (8, 128) partial tile: lane 0 = smoothing partial,
    # lane 1 = nll partial (single iota + nested where).
    lane = lax.broadcasted_iota(jnp.int32, (8, 128), 1)
    out_ref[0] = jnp.where(lane == 0, p_sum,
                           jnp.where(lane == 1, p_nll, jnp.float32(0.0)))


def label_smoothing_cross_entropy(preds, target, epsilon=0.3, tile_n=None):
    """Pallas implementation of LabelSmoothingCrossEntropy(reduction='mean')."""
    n, c = preds.shape
    itemsize = jnp.dtype(preds.dtype).itemsize
    # Sublane alignment for the row tiling (8 for 32-bit, 16 for bf16, ...).
    row_align = max(8, 32 // itemsize)

    # Per-generation VMEM capacity (v5e/v6e: 128 MiB, v7x: 64 MiB per TC).
    try:
        vmem_cap = int(pltpu.get_tpu_info().vmem_capacity_bytes)
    except Exception:  # no TPU info available -> assume the smallest (v7x)
        vmem_cap = 64 * 1024 * 1024

    if tile_n is None:
        # Size the tile from the TOTAL VMEM footprint, not just the HBM block:
        #   2 x tile (double-buffered input, in the input dtype)
        # + ~4 x tile (full-size f32/int32 temporaries: f32 upcast, exp,
        #              column iota, one-hot select) materialized by the body.
        # ~40% of VMEM leaves comfortable headroom on v7x's 64 MiB and yields
        # ~4 MiB input blocks on v5e/v6e, ~2-3 MiB on v7x.
        target_total = int(vmem_cap * 0.4)
        per_row = 2 * c * itemsize + 4 * c * 4
        cap_rows = max(row_align,
                       (target_total // per_row) // row_align * row_align)
        tile_n = min(_round_up(n, row_align), cap_rows)
        # Keep >= 2 grid steps when the batch allows it, so the "parallel"
        # axis shards across both v7x TensorCores (and pipelining overlaps).
        if n >= 2 * row_align and _cdiv(n, tile_n) < 2:
            tile_n = _round_up(_cdiv(n, 2), row_align)
    tile_n = int(tile_n)

    num_tiles = _cdiv(n, tile_n)          # ragged last tile handled in-kernel
    target2d = target.astype(jnp.int32).reshape(n, 1)

    kernel = functools.partial(_ls_ce_kernel, n_rows=n, n_cls=c)

    partials = pl.pallas_call(
        kernel,
        out_shape=jax.ShapeDtypeStruct((num_tiles, 8, 128), jnp.float32),
        grid_spec=pltpu.PrefetchScalarGridSpec(
            num_scalar_prefetch=0,
            grid=(num_tiles,),
            in_specs=[
                pl.BlockSpec((tile_n, c), lambda i: (i, 0)),
                pl.BlockSpec((tile_n, 1), lambda i: (i, 0)),
            ],
            out_specs=pl.BlockSpec((1, 8, 128), lambda i: (i, 0, 0)),
        ),
        compiler_params=pltpu.CompilerParams(
            dimension_semantics=("parallel",),
            vmem_limit_bytes=min(vmem_cap * 3 // 4, 96 * 1024 * 1024),
        ),
    )(preds, target2d)

    # Final mean / epsilon combine in f32 outside the kernel (better
    # accumulation across tiles and keeps the grid axis fully parallel).
    sum_smooth = jnp.sum(partials[:, 0, 0])
    sum_nll = jnp.sum(partials[:, 0, 1])
    loss_mean = sum_smooth / jnp.float32(n)
    nll_mean = sum_nll / jnp.float32(n)
    eps = jnp.float32(epsilon)
    return eps * (loss_mean / jnp.float32(c)) + (jnp.float32(1.0) - eps) * nll_mean


def _reference(preds, target, epsilon=0.3):
    logp = jax.nn.log_softmax(preds.astype(jnp.float32), axis=1)
    loss = jnp.mean(-jnp.sum(logp, axis=1))
    nll = jnp.mean(-jnp.take_along_axis(logp, target[:, None], axis=1)[:, 0])
    c = preds.shape[1]
    return epsilon * (loss / c) + (1.0 - epsilon) * nll


if __name__ == "__main__":
    key = jax.random.PRNGKey(0)
    k1, k2, k3, k4 = jax.random.split(key, 4)

    # Case 1: batch=8, classes=32, f32 (single tile, auto heuristic).
    N1, C1 = 8, 32
    preds1 = jax.random.normal(k1, (N1, C1), dtype=jnp.float32)
    target1 = jax.random.randint(k2, (N1,), 0, C1, dtype=jnp.int32)
    out1 = jax.block_until_ready(
        label_smoothing_cross_entropy(preds1, target1, epsilon=0.3)
    )
    ref1 = _reference(preds1, target1, epsilon=0.3)
    assert jnp.allclose(out1, ref1, atol=1e-4, rtol=1e-4), (out1, ref1)

    # Case 2: ragged batch (50 % 16 != 0), multi-tile grid, bf16 logits —
    # exercises the pad-free OOB masking path and the bf16 / MXU passes.
    N2, C2 = 50, 96
    preds2 = jax.random.normal(k3, (N2, C2), dtype=jnp.float32).astype(jnp.bfloat16)
    target2 = jax.random.randint(k4, (N2,), 0, C2, dtype=jnp.int32)
    out2 = jax.block_until_ready(
        label_smoothing_cross_entropy(preds2, target2, epsilon=0.3, tile_n=16)
    )
    ref2 = _reference(preds2.astype(jnp.float32), target2, epsilon=0.3)
    assert jnp.allclose(out2, ref2, atol=2e-2, rtol=2e-2), (out2, ref2)

    print("KERNEL_OK")
</pallas_src>

<mosaic_0001>
module attributes {stable_mosaic.version = 11 : i64} {
  func.func @_ls_ce_kernel(%arg0: i32, %arg1: memref<8x32xf32, #tpu.memory_space<vmem>>, %arg2: memref<8x1xi32, #tpu.memory_space<vmem>>, %arg3: memref<1x8x128xf32, #tpu.memory_space<vmem>>) attributes {dimension_semantics = [#tpu.dimension_semantics<parallel>], iteration_bounds = array<i64: 1>, scalar_prefetch = 0 : i64, scratch_operands = 0 : i64, tpu.core_type = #tpu.core_type<tc>, window_params = [{transform_indices = @transform_0, window_bounds = array<i64: 8, 32>}, {transform_indices = @transform_1, window_bounds = array<i64: 8, 1>}, {transform_indices = @transform_2, window_bounds = array<i64: 1, 8, 128>}]} {
    %c0 = arith.constant 0 : index
    %c0_0 = arith.constant 0 : index
    %0 = vector.load %arg1[%c0, %c0_0] : memref<8x32xf32, #tpu.memory_space<vmem>>, vector<8x32xf32>
    %c0_1 = arith.constant 0 : index
    %c0_2 = arith.constant 0 : index
    %1 = vector.load %arg2[%c0_1, %c0_2] : memref<8x1xi32, #tpu.memory_space<vmem>>, vector<8x1xi32>
    %c8_i32 = arith.constant 8 : i32
    %2 = arith.muli %arg0, %c8_i32 : i32
    %3 = tpu.iota {dimensions = array<i32: 0>} : vector<8x1xi32>
    %4 = vector.broadcast %2 : i32 to vector<8x1xi32>
    %5 = arith.addi %4, %3 : vector<8x1xi32>
    %c8_i32_3 = arith.constant 8 : i32
    %6 = vector.broadcast %c8_i32_3 : i32 to vector<8x1xi32>
    %7 = arith.cmpi slt, %5, %6 : vector<8x1xi32>
    %cst = arith.constant dense<0xFF800000> : vector<8xf32>
    %8 = vector.multi_reduction <maximumf>, %0, %cst [1] : vector<8x32xf32> to vector<8xf32>
    %9 = vector.shape_cast %8 : vector<8xf32> to vector<8x1xf32>
    %10 = vector.broadcast %9 : vector<8x1xf32> to vector<8x32xf32>
    %11 = arith.subf %0, %10 : vector<8x32xf32>
    %12 = math.exp %11 : vector<8x32xf32>
    %cst_4 = arith.constant dense<0.000000e+00> : vector<8xf32>
    %13 = vector.multi_reduction <add>, %12, %cst_4 [1] : vector<8x32xf32> to vector<8xf32>
    %14 = vector.shape_cast %13 : vector<8xf32> to vector<8x1xf32>
    %15 = math.log %14 : vector<8x1xf32>
    %16 = arith.addf %9, %15 : vector<8x1xf32>
    %17 = tpu.iota {dimensions = array<i32: 1>} : vector<8x32xi32>
    %18 = vector.broadcast %1 : vector<8x1xi32> to vector<8x32xi32>
    %19 = arith.cmpi eq, %17, %18 : vector<8x32xi32>
    %cst_5 = arith.constant 0.000000e+00 : f32
    %20 = vector.broadcast %cst_5 : f32 to vector<8x32xf32>
    %21 = arith.select %19, %0, %20 : vector<8x32xi1>, vector<8x32xf32>
    %cst_6 = arith.constant dense<0.000000e+00> : vector<8xf32>
    %22 = vector.multi_reduction <add>, %21, %cst_6 [1] : vector<8x32xf32> to vector<8xf32>
    %23 = vector.shape_cast %22 : vector<8xf32> to vector<8x1xf32>
    %cst_7 = arith.constant dense<0.000000e+00> : vector<8xf32>
    %24 = vector.multi_reduction <add>, %0, %cst_7 [1] : vector<8x32xf32> to vector<8xf32>
    %25 = vector.shape_cast %24 : vector<8xf32> to vector<8x1xf32>
    %cst_8 = arith.constant 3.200000e+01 : f32
    %26 = vector.broadcast %cst_8 : f32 to vector<8x1xf32>
    %27 = arith.mulf %26, %16 : vector<8x1xf32>
    %28 = arith.subf %27, %25 : vector<8x1xf32>
    %29 = arith.subf %16, %23 : vector<8x1xf32>
    %cst_9 = arith.constant 0.000000e+00 : f32
    %30 = vector.broadcast %cst_9 : f32 to vector<8x1xf32>
    %31 = arith.select %7, %28, %30 : vector<8x1xi1>, vector<8x1xf32>
    %32 = vector.shape_cast %31 : vector<8x1xf32> to vector<1x8x1xf32>
    %cst_10 = arith.constant dense<0.000000e+00> : vector<1xf32>
    %33 = vector.multi_reduction <add>, %32, %cst_10 [1, 2] : vector<1x8x1xf32> to vector<1xf32>
    %34 = vector.shape_cast %33 : vector<1xf32> to vector<1x1x1xf32>
    %35 = vector.extract %34[0, 0, 0] : f32 from vector<1x1x1xf32>
    %36 = arith.select %7, %29, %30 : vector<8x1xi1>, vector<8x1xf32>
    %37 = vector.shape_cast %36 : vector<8x1xf32> to vector<1x8x1xf32>
    %cst_11 = arith.constant dense<0.000000e+00> : vector<1xf32>
    %38 = vector.multi_reduction <add>, %37, %cst_11 [1, 2] : vector<1x8x1xf32> to vector<1xf32>
    %39 = vector.shape_cast %38 : vector<1xf32> to vector<1x1x1xf32>
    %40 = vector.extract %39[0, 0, 0] : f32 from vector<1x1x1xf32>
    %41 = tpu.iota {dimensions = array<i32: 1>} : vector<8x128xi32>
    %c0_i32 = arith.constant 0 : i32
    %42 = vector.broadcast %c0_i32 : i32 to vector<8x128xi32>
    %43 = arith.cmpi eq, %41, %42 : vector<8x128xi32>
    %c1_i32 = arith.constant 1 : i32
    %44 = vector.broadcast %c1_i32 : i32 to vector<8x128xi32>
    %45 = arith.cmpi eq, %41, %44 : vector<8x128xi32>
    %cst_12 = arith.constant 0.000000e+00 : f32
    %46 = vector.broadcast %40 : f32 to vector<8x128xf32>
    %47 = vector.broadcast %cst_12 : f32 to vector<8x128xf32>
    %48 = arith.select %45, %46, %47 : vector<8x128xi1>, vector<8x128xf32>
    %49 = vector.broadcast %35 : f32 to vector<8x128xf32>
    %50 = arith.select %43, %49, %48 : vector<8x128xi1>, vector<8x128xf32>
    %c0_13 = arith.constant 0 : index
    %c0_14 = arith.constant 0 : index
    %c0_15 = arith.constant 0 : index
    %51 = vector.load %arg3[%c0_13, %c0_14, %c0_15] : memref<1x8x128xf32, #tpu.memory_space<vmem>>, vector<1x8x128xf32>
    %52 = vector.shape_cast %51 : vector<1x8x128xf32> to vector<8x128xf32>
    %53 = vector.shape_cast %50 : vector<8x128xf32> to vector<1x8x128xf32>
    tpu.vector_store %arg3[%c0_13, %c0_14, %c0_15], %53 {strides = array<i32>} : memref<1x8x128xf32, #tpu.memory_space<vmem>>, vector<1x8x128xf32>,
    return
  }
  func.func @transform_0(%arg0: i32) -> (i32, i32) {
    %c0_i32 = arith.constant 0 : i32
    %c0_i32_0 = arith.constant 0 : i32
    return %arg0, %c0_i32 : i32, i32
  }
  func.func @transform_1(%arg0: i32) -> (i32, i32) {
    %c0_i32 = arith.constant 0 : i32
    %c0_i32_0 = arith.constant 0 : i32
    return %arg0, %c0_i32 : i32, i32
  }
  func.func @transform_2(%arg0: i32) -> (i32, i32, i32) {
    %c0_i32 = arith.constant 0 : i32
    %c0_i32_0 = arith.constant 0 : i32
    %c0_i32_1 = arith.constant 0 : i32
    return %arg0, %c0_i32, %c0_i32_0 : i32, i32, i32
  }
}

</mosaic_0001>

<llo_original>
// kernel: tpu_custom_call.1
$region0: #{tpu_custom_call.1}
  #allocation0 [shape = 'u32[]', space=smem, size = 0x4, offset = 0x4, fixed_abs, tag = 'smem constant byte address 0x4 - core index']
  #allocation1 [shape = 'u32[144,128]{1,0:T(1,128)}', space=vmem, size = 0x12000, scoped, tag = 'internal scratch']
  %s0 = inlined_call_operand.vmem [shape: f32[8,32], index: 0, kind: input, shape index: {}]
  %s1 = inlined_call_operand.vmem [shape: s32[8,1], index: 1, kind: input, shape index: {}]
  %s2 = inlined_call_operand.hbm [shape: f32[1,8,128], index: 2, kind: output, shape index: {}]
  %s3 = sld [smem:[#allocation0]]
  $region18: #{tpu_custom_call.1} parent=0
    _
  %s5 = ssub.s32 1, %s3
  %s6 = scalar_select 0, %s5, %s3
  $region1: #{tpu_custom_call.1} parent=0
    #allocation2 [shape = 'u8[4096]{0}', space=vmem, size = 0x1000, scoped, tag = 'output window, operand 0, single buffered']
    #allocation3 [shape = 's32[1]{0}', space=sflag, size = 0x4, scoped, tag = 'scoped memory for tpu_custom_call.1']
    %7 = vsyncpa [#allocation3], 0
    // Predicated region
    $region2: #{tpu_custom_call.1} parent=1 // pred_check
      _
    $region3: #{tpu_custom_call.1} parent=1 // pred_check_branch
      %9 = sbr.rel (0) target = $region5
    $region4: #{tpu_custom_call.1} parent=1 // pred_region
      _
    $region5: #{tpu_custom_call.1} parent=1 // pred_fallthru
      _
    // Predicated region
    $region6: #{tpu_custom_call.1} parent=1 // pred_check
      _
    $region7: #{tpu_custom_call.1} parent=1 // pred_check_branch
      %11 = sbr.rel (0) target = $region9
    $region8: #{tpu_custom_call.1} parent=1 // pred_region
      _
    $region9: #{tpu_custom_call.1} parent=1 // pred_fallthru
      _
    %v12 = vld [vmem:[%s0] sm:$0xff]
    %v13 = vld [vmem:[%s1] sm:$0xff]
    %s14 = smul.u32 0, 8
    %v15 = vlaneseq
    %v16 = vshrl.u32 %v15, 7
    %v17 = vstv %s14
    %v18 = vadd.s32 %v17, %v16
    %vm19 = vcmp.lt.s32.totalorder %v18, 8
    %vm20 = vcmask 261120
    %v21 = vsel %vm20, %v12, -inf
    %22 = vmax.xlane.f32.xlu0 %v21
    %v23 = vpop.xlane.xlu0 %22
    %v24 = vsub.f32 %v12, %v23
    %v25 = vmul.f32 %v24, 1.442695
    %v26 = vpow.pop %v25
    %v27 = vsel %vm20, %v26, 0.0
    %28 = vadd.xlane.f32.xlu0 %v27
    %v29 = vpop.xlane.xlu0 %28
    %v30 = vlog2.pop %v29
    %v31 = vmul.f32 %v30, 0.6931472
    %v32 = vadd.f32 %v23, %v31
    %v33 = vlaneseq
    %v34 = vand.u32 %v33, 127
    %35 = vset.pattern.permute.xlu0 0
    %36 = vperm.xlu0 %35, %v13
    %v37 = vpop.permute.xlu0 %36
    %vm38 = vcmp.eq.s32.totalorder %v34, %v37
    %v39 = vsel %vm38, %v12, 0.0
    %v40 = vsel %vm20, %v39, 0.0
    %41 = vadd.xlane.f32.xlu0 %v40
    %v42 = vpop.xlane.xlu0 %41
    %v43 = vsel %vm20, %v12, 0.0
    %44 = vadd.xlane.f32.xlu0 %v43
    %v45 = vpop.xlane.xlu0 %44
    %v46 = vmul.f32 %v32, 32.0
    %v47 = vsub.f32 %v46, %v45
    %v48 = vsub.f32 %v32, %v42
    %v49 = vsel %vm19, %v47, 0.0
    %vm50 = vcmask 7168
    %v51 = vsel %vm50, %v49, 0.0
    %52 = vadd.xlane.f32.xlu0 %v51
    %v53 = vpop.xlane.xlu0 %52
    %v54 = vrot.slane %v53, 4
    %v55 = vadd.f32 %v53, %v54
    %v56 = vrot.slane %v55, 2
    %v57 = vadd.f32 %v55, %v56
    %v58 = vrot.slane %v57, 1
    %v59 = vadd.f32 %v57, %v58
    %s60 = vtos %v59
    %v61 = vsel %vm19, %v48, 0.0
    %v62 = vsel %vm50, %v61, 0.0
    %63 = vadd.xlane.f32.xlu0 %v62
    %v64 = vpop.xlane.xlu0 %63
    %v65 = vrot.slane %v64, 4
    %v66 = vadd.f32 %v64, %v65
    %v67 = vrot.slane %v66, 2
    %v68 = vadd.f32 %v66, %v67
    %v69 = vrot.slane %v68, 1
    %v70 = vadd.f32 %v68, %v69
    %s71 = vtos %v70
    %vm72 = vcmp.eq.s32.totalorder %v34, 0
    %vm73 = vcmp.eq.s32.totalorder %v34, 1
    %v74 = vstv %s71
    %v75 = vsel %vm73, %v74, 0.0
    %v76 = vstv %s60
    %v77 = vsel %vm72, %v76, %v75
    %78 = vst [vmem:[#allocation2] sm:$0xff] %v77
    // Predicated region
    $region10: #{tpu_custom_call.1} parent=1 // pred_check
      _
    $region11: #{tpu_custom_call.1} parent=1 // pred_check_branch
      %80 = sbr.rel (0) target = $region13
    $region12: #{tpu_custom_call.1} parent=1 // pred_region
      %s82 = ssub.s32 128, 128
      %83 = vsyncadd [#allocation3], %s82
      %s85 = sshll.u32 [#allocation2], 4
      %s86 = int_to_ptr.vmem [resolvable:$true] %s85
      %88 = dma.vmem_to_hbm [thread:$0]  %s86, 128, %s2, [#allocation3]
    $region13: #{tpu_custom_call.1} parent=1 // pred_fallthru
      _
    // Predicated region
    $region14: #{tpu_custom_call.1} parent=1 // pred_check
      _
    $region15: #{tpu_custom_call.1} parent=1 // pred_check_branch
      %90 = sbr.rel (0) target = $region17
    $region16: #{tpu_custom_call.1} parent=1 // pred_region
      %91 = dma.done [#allocation3], 128
    $region17: #{tpu_custom_call.1} parent=1 // pred_fallthru
      _
    %92 = vsyncpa [#allocation3], 1

</llo_original>
